<compile_context>
chip_gen: v5e
topology: v5e:2x2
jax: 0.10.0
libtpu: 0.0.40
codegen_flags: <defaults>
</compile_context>

<pallas_src>
import functools

import jax
import jax.numpy as jnp
from jax.experimental import pallas as pl
from jax.experimental.pallas import tpu as pltpu


def _cdiv(a, b):
    return -(-a // b)


def _round_down(v, m):
    return (v // m) * m


def _vmem_budget():
    """Per-generation VMEM budget for tiling and a raised scoped compiler limit."""
    phys = 64 * 1024 * 1024               # conservative fallback (v7x per-core VMEM)
    try:
        cap = getattr(pltpu.get_tpu_info(), "vmem_capacity_bytes", None)
        if cap:
            phys = int(cap)
    except Exception:
        pass
    budget = int(phys * 0.70)             # what the tile-selection math may consume
    vmem_limit = int(phys * 0.85)         # scoped limit handed to the compiler
    return budget, vmem_limit


def _spec(block_shape, index_map, buffers=None):
    """BlockSpec with optional deeper pipelining; falls back if unsupported."""
    if buffers is None or buffers <= 2:
        return pl.BlockSpec(block_shape, index_map)
    try:
        return pl.BlockSpec(block_shape, index_map, pipeline_mode=pl.Buffered(buffers))
    except Exception:
        return pl.BlockSpec(block_shape, index_map)


# ----------------------------------------------------------------------------- kernels
def _conv1x1_kernel(x_ref, w_ref, b_ref, o_ref, *, bf16_matmul):
    # x_ref: (Cin, T), w_ref: (Cout_t, Cin), b_ref: (Cout_t, 1), o_ref: (Cout_t, T)
    x = x_ref[...]
    w = w_ref[...]
    if bf16_matmul:
        x = x.astype(jnp.bfloat16)
        w = w.astype(jnp.bfloat16)
    acc = jnp.dot(w, x, preferred_element_type=jnp.float32)
    o_ref[...] = (acc + b_ref[...].astype(jnp.float32)).astype(o_ref.dtype)


def _conv1x1_kernel_acc(x_ref, w_ref, b_ref, o_ref, acc_ref, *, bf16_matmul):
    # K-tiled variant: grid = (N, Cout tiles, HW tiles, K tiles), K innermost.
    k = pl.program_id(3)

    @pl.when(k == 0)
    def _():
        acc_ref[...] = jnp.zeros_like(acc_ref)

    x = x_ref[...]
    w = w_ref[...]
    if bf16_matmul:
        x = x.astype(jnp.bfloat16)
        w = w.astype(jnp.bfloat16)
    acc_ref[...] += jnp.dot(w, x, preferred_element_type=jnp.float32)

    @pl.when(k == pl.num_programs(3) - 1)
    def _():
        o_ref[...] = (acc_ref[...] + b_ref[...].astype(jnp.float32)).astype(o_ref.dtype)


# ----------------------------------------------------------------------------- tiling
def _select_tiling(N, Cin, Cout, HW, x_dtype, out_dtype, budget):
    itemsize = jnp.dtype(x_dtype).itemsize
    out_itemsize = jnp.dtype(out_dtype).itemsize

    # --- channel tiling: keep the (double-buffered) weight block to ~1/3 budget.
    w_budget = max(budget // 3, 1)
    tile_cout, tile_k = Cout, Cin
    if 2 * Cout * Cin * itemsize > w_budget and Cout > 8:
        tco = w_budget // (2 * Cin * itemsize)
        tco = max(8, _round_down(min(max(tco, 8), Cout), 8))
        if tco >= 128:
            tco = _round_down(tco, 128)
        tile_cout = min(Cout, tco)
    if (2 * tile_cout * Cin * itemsize > w_budget
            and Cin >= 256 and Cin % 128 == 0):
        tk = w_budget // (2 * tile_cout * itemsize)
        tk = max(128, _round_down(tk, 128))
        while tk > 128 and Cin % tk != 0:     # ragged K would contract garbage
            tk -= 128
        if Cin % tk == 0:
            tile_k = tk
    # TODO(synk): huge Cin that is not a multiple of 128 stays fully resident.

    k_tiled = tile_k < Cin

    # --- HW (lane) tile: fill the remaining budget, cap at 2048 columns.
    resident = 2 * (tile_cout * tile_k + tile_cout) * itemsize   # w + b, 2 buffers
    per_col = (2 * tile_k * itemsize            # activation tile, double-buffered
               + 2 * tile_cout * out_itemsize   # output tile, double-buffered
               + tile_cout * 4)                 # f32 matmul intermediate
    if k_tiled:
        per_col += tile_cout * 4                # explicit f32 scratch accumulator
    cols = max(128, (budget - resident) // max(per_col, 1))
    cap = 2048                                  # diminishing returns above ~1024

    if HW <= min(cols, cap):
        tile_hw = HW                            # full extent: always a legal block
    else:
        t = max(128, _round_down(min(cols, cap), 128))
        tile_hw = t
        # Prefer an even divisor of HW only while tiles stay fat; otherwise keep t
        # and accept one masked ragged tail block.
        cand, thresh = t, max(512, t // 2)
        while cand >= thresh:
            if HW % cand == 0:
                tile_hw = cand
                break
            cand -= 128

    # --- v7x megacore: make sure there are at least 2 parallel grid points.
    n_par = N * _cdiv(Cout, tile_cout) * _cdiv(HW, tile_hw)
    if n_par < 2 and HW >= 256:
        tile_hw = max(128, _round_down(_cdiv(HW, 2), 128))

    # --- deeper pipelining when per-step tiles are short and the grid is long.
    stream_bufs = 3 if (tile_hw <= 256 and _cdiv(HW, tile_hw) >= 4) else None

    return tile_cout, tile_k, tile_hw, stream_bufs


# ----------------------------------------------------------------------------- wrapper
def conv1x1_pallas(x_nchw, weight, bias, *, tile_cout=None, tile_k=None,
                   tile_hw=None, use_bf16_matmul=False):
    """1x1 convolution, stride 1, padding 0, with bias, on NCHW input.

    x_nchw : (N, Cin, H, W)
    weight : (Cout, Cin, 1, 1)   (PyTorch Conv2d layout)
    bias   : (Cout,)
    returns (N, Cout, H, W)
    """
    N, Cin, H, W = x_nchw.shape
    Cout = weight.shape[0]
    HW = H * W

    # Free reshapes only — stays in NCHW memory order.
    x3 = x_nchw.reshape(N, Cin, HW)
    w_mat = weight.reshape(Cout, Cin)
    b_col = bias.reshape(Cout, 1)

    budget, vmem_limit = _vmem_budget()
    a_tco, a_tk, a_thw, stream_bufs = _select_tiling(
        N, Cin, Cout, HW, x_nchw.dtype, x_nchw.dtype, budget)
    tile_cout = a_tco if tile_cout is None else tile_cout
    tile_k = a_tk if tile_k is None else tile_k
    tile_hw = a_thw if tile_hw is None else tile_hw

    k_tiled = tile_k < Cin
    n_co = _cdiv(Cout, tile_cout)
    n_hw = _cdiv(HW, tile_hw)

    itemsize = jnp.dtype(x_nchw.dtype).itemsize
    cost = pl.CostEstimate(
        flops=2 * N * HW * Cin * Cout,
        transcendentals=0,
        bytes_accessed=itemsize * (N * HW * (Cin + Cout) + Cin * Cout + Cout),
    )

    # TODO(synk): add an NHWC-flattened path (lanes = Cout) for HW < 128 with large
    # Cout to avoid masked partial stores on the short HW lane dim.
    if k_tiled:
        x_spec = _spec((None, tile_k, tile_hw), lambda n, co, j, k: (n, k, j),
                       stream_bufs)
        w_spec = pl.BlockSpec((tile_cout, tile_k), lambda n, co, j, k: (co, k))
        b_spec = pl.BlockSpec((tile_cout, 1), lambda n, co, j, k: (co, 0))
        o_spec = _spec((None, tile_cout, tile_hw), lambda n, co, j, k: (n, co, j),
                       stream_bufs)
        grid = (N, n_co, n_hw, Cin // tile_k)
        kernel = functools.partial(_conv1x1_kernel_acc, bf16_matmul=use_bf16_matmul)
        scratch = [pltpu.VMEM((tile_cout, tile_hw), jnp.float32)]
        dims = ("parallel", "parallel", "parallel", "arbitrary")
    else:
        x_spec = _spec((None, tile_k, tile_hw), lambda n, co, j: (n, 0, j),
                       stream_bufs)
        w_spec = pl.BlockSpec((tile_cout, tile_k), lambda n, co, j: (co, 0))
        b_spec = pl.BlockSpec((tile_cout, 1), lambda n, co, j: (co, 0))
        o_spec = _spec((None, tile_cout, tile_hw), lambda n, co, j: (n, co, j),
                       stream_bufs)
        grid = (N, n_co, n_hw)
        kernel = functools.partial(_conv1x1_kernel, bf16_matmul=use_bf16_matmul)
        scratch = []
        dims = ("parallel", "parallel", "parallel")

    y3 = pl.pallas_call(
        kernel,
        out_shape=jax.ShapeDtypeStruct((N, Cout, HW), x_nchw.dtype),
        grid_spec=pltpu.PrefetchScalarGridSpec(
            num_scalar_prefetch=0,
            grid=grid,
            in_specs=[x_spec, w_spec, b_spec],
            out_specs=o_spec,
            scratch_shapes=scratch,
        ),
        compiler_params=pltpu.CompilerParams(
            dimension_semantics=dims,
            vmem_limit_bytes=vmem_limit),
        cost_estimate=cost,
    )(x3, w_mat, b_col)

    return y3.reshape(N, Cout, H, W)


# ----------------------------------------------------------------------------- tests
def _init_params(key, cin, cout):
    k_w, k_b = jax.random.split(key)
    fan_in = cin  # 1x1 kernel
    bound = 1.0 / (fan_in ** 0.5)
    weight = jax.random.uniform(k_w, (cout, cin, 1, 1), jnp.float32, -bound, bound)
    bias = jax.random.uniform(k_b, (cout,), jnp.float32, -bound, bound)
    return weight, bias


def _ref_conv1x1(x, weight, bias):
    cout, cin = weight.shape[0], weight.shape[1]
    return (jnp.einsum("nchw,oc->nohw", x, weight.reshape(cout, cin))
            + bias[None, :, None, None])


if __name__ == "__main__":
    key = jax.random.PRNGKey(0)
    k1, k2, k3, k4 = jax.random.split(key, 4)

    # --- Test 1: module-default small shape, auto-selected tiling --------------
    N, Cin, H, W = 2, 4, 16, 16
    Cout = 8
    x = jax.random.normal(k1, (N, Cin, H, W), dtype=jnp.float32)
    weight, bias = _init_params(k2, Cin, Cout)

    y = conv1x1_pallas(x, weight, bias)
    y = jax.block_until_ready(y)
    ref = _ref_conv1x1(x, weight, bias)
    assert y.shape == (N, Cout, H, W)
    assert jnp.allclose(y, ref, atol=1e-5, rtol=1e-5)

    # --- Test 2: forced Cout / K / HW tiling exercises the accumulator kernel,
    #             Cout tiles, and a ragged HW tail ------------------------------
    N2, Cin2, H2, W2 = 1, 256, 12, 12
    Cout2 = 16
    x2 = jax.random.normal(k3, (N2, Cin2, H2, W2), dtype=jnp.float32)
    weight2, bias2 = _init_params(k4, Cin2, Cout2)

    y2 = conv1x1_pallas(x2, weight2, bias2,
                        tile_cout=8, tile_k=128, tile_hw=128)
    y2 = jax.block_until_ready(y2)
    ref2 = _ref_conv1x1(x2, weight2, bias2)
    assert y2.shape == (N2, Cout2, H2, W2)
    assert jnp.allclose(y2, ref2, atol=5e-3, rtol=5e-3)

    print("KERNEL_OK")
</pallas_src>

<mosaic_0001>
module attributes {stable_mosaic.version = 11 : i64} {
  func.func @_conv1x1_kernel(%arg0: i32, %arg1: i32, %arg2: i32, %arg3: memref<1x4x256xf32, #tpu.memory_space<vmem>>, %arg4: memref<8x4xf32, #tpu.memory_space<vmem>>, %arg5: memref<8x1xf32, #tpu.memory_space<vmem>>, %arg6: memref<1x8x256xf32, #tpu.memory_space<vmem>>) attributes {dimension_semantics = [#tpu.dimension_semantics<parallel>, #tpu.dimension_semantics<parallel>, #tpu.dimension_semantics<parallel>], iteration_bounds = array<i64: 2, 1, 1>, scalar_prefetch = 0 : i64, scratch_operands = 0 : i64, tpu.core_type = #tpu.core_type<tc>, window_params = [{transform_indices = @transform_0, window_bounds = array<i64: 1, 4, 256>}, {transform_indices = @transform_1, window_bounds = array<i64: 8, 4>}, {transform_indices = @transform_2, window_bounds = array<i64: 8, 1>}, {transform_indices = @transform_3, window_bounds = array<i64: 1, 8, 256>}]} {
    %c0 = arith.constant 0 : index
    %c0_0 = arith.constant 0 : index
    %c0_1 = arith.constant 0 : index
    %0 = vector.load %arg3[%c0, %c0_0, %c0_1] : memref<1x4x256xf32, #tpu.memory_space<vmem>>, vector<1x4x256xf32>
    %1 = vector.shape_cast %0 : vector<1x4x256xf32> to vector<4x256xf32>
    %c0_2 = arith.constant 0 : index
    %c0_3 = arith.constant 0 : index
    %2 = vector.load %arg4[%c0_2, %c0_3] : memref<8x4xf32, #tpu.memory_space<vmem>>, vector<8x4xf32>
    %cst = arith.constant dense<0.000000e+00> : vector<8x256xf32>
    %3 = tpu.matmul %2, %1, %cst {dimension_numbers = #tpu.dot_dimension_numbers<[1], [0], [0], [1], [0, 0, 1, 1], [], []>} : vector<8x4xf32>, vector<4x256xf32>, vector<8x256xf32> -> vector<8x256xf32>
    %c0_4 = arith.constant 0 : index
    %c0_5 = arith.constant 0 : index
    %4 = vector.load %arg5[%c0_4, %c0_5] : memref<8x1xf32, #tpu.memory_space<vmem>>, vector<8x1xf32>
    %5 = vector.broadcast %4 : vector<8x1xf32> to vector<8x256xf32>
    %6 = arith.addf %3, %5 : vector<8x256xf32>
    %c0_6 = arith.constant 0 : index
    %c0_7 = arith.constant 0 : index
    %c0_8 = arith.constant 0 : index
    %7 = vector.load %arg6[%c0_6, %c0_7, %c0_8] : memref<1x8x256xf32, #tpu.memory_space<vmem>>, vector<1x8x256xf32>
    %8 = vector.shape_cast %7 : vector<1x8x256xf32> to vector<8x256xf32>
    %9 = vector.shape_cast %6 : vector<8x256xf32> to vector<1x8x256xf32>
    tpu.vector_store %arg6[%c0_6, %c0_7, %c0_8], %9 {strides = array<i32>} : memref<1x8x256xf32, #tpu.memory_space<vmem>>, vector<1x8x256xf32>,
    return
  }
  func.func @transform_0(%arg0: i32, %arg1: i32, %arg2: i32) -> (i32, i32, i32) {
    %c0_i32 = arith.constant 0 : i32
    %c0_i32_0 = arith.constant 0 : i32
    return %arg0, %c0_i32, %arg2 : i32, i32, i32
  }
  func.func @transform_1(%arg0: i32, %arg1: i32, %arg2: i32) -> (i32, i32) {
    %c0_i32 = arith.constant 0 : i32
    %c0_i32_0 = arith.constant 0 : i32
    return %arg1, %c0_i32 : i32, i32
  }
  func.func @transform_2(%arg0: i32, %arg1: i32, %arg2: i32) -> (i32, i32) {
    %c0_i32 = arith.constant 0 : i32
    %c0_i32_0 = arith.constant 0 : i32
    return %arg1, %c0_i32 : i32, i32
  }
  func.func @transform_3(%arg0: i32, %arg1: i32, %arg2: i32) -> (i32, i32, i32) {
    %c0_i32 = arith.constant 0 : i32
    return %arg0, %arg1, %arg2 : i32, i32, i32
  }
}

</mosaic_0001>

<llo_original>
// kernel: tpu_custom_call.1
$region0: #{tpu_custom_call.1}
  #allocation0 [shape = 'u32[]', space=smem, size = 0x4, offset = 0x4, fixed_abs, tag = 'smem constant byte address 0x4 - core index']
  #allocation1 [shape = 'u32[72,128]{1,0:T(1,128)}', space=vmem, size = 0x9000, scoped, tag = 'internal scratch']
  %s0 = inlined_call_operand.vmem [shape: f32[2,4,256], index: 0, kind: input, shape index: {}]
  %s1 = inlined_call_operand.vmem [shape: f32[8,4], index: 1, kind: input, shape index: {}]
  %s2 = inlined_call_operand.vmem [shape: f32[8,1], index: 2, kind: input, shape index: {}]
  %s3 = inlined_call_operand.hbm [shape: f32[2,8,256], index: 3, kind: output, shape index: {}]
  %s4 = sld [smem:[#allocation0]]
  $region45: #{tpu_custom_call.1} parent=0
    _
  %s6 = ssub.s32 1, %s4
  %s7 = scalar_select 0, %s6, %s4
  $region1: #{tpu_custom_call.1} parent=0
    #allocation2 [shape = 'u8[16384]{0}', space=vmem, size = 0x4000, scoped, tag = 'output window, operand 0']
    #allocation3 [shape = 's32[2]{0}', space=sflag, size = 0x8, scoped, tag = 'scoped memory for tpu_custom_call.1']
    %8 = vsyncpa [#allocation3], 0
    %s9 = scalar_lea.sflag [#allocation3], 1
    %10 = vsyncpa %s9, 0
    loop: start=0, step=1, limit=4
    $region2: #{tpu_custom_call.1} parent=1 // loop_pre_header
      _
    $region3: #{tpu_custom_call.1} parent=1 // loop_header
      %s12 = sphi 0, %s16
      %p13 = scmp.ge.s32.totalorder %s12, 4
      %s19 = sphi 0, %s38
      %s20 = sphi 0, %s34
      %s21 = sphi 0, %s30
      %s22 = sphi 0, %s19
      %s23 = sphi 0, %s20
      %s24 = sphi 0, %s21
      %s25 = sphi 0, %s22
      %s26 = sphi 0, %s23
      %s27 = sphi 0, %s24
      %s43 = sphi 0, %s45
      %s46 = sphi 0, %s43
      %s47 = sphi 0, %s46
      %s63 = sphi 0, %s47
      %s69 = sphi 0, %s71
      %s72 = sphi 0, %s69
      %s73 = sphi 0, %s72
      %s89 = sphi 0, %s73
      %s95 = sphi 0, %s97
      %s98 = sphi 0, %s95
      %s99 = sphi 0, %s98
      %s115 = sphi 0, %s99
      %s125 = sphi 0, %s127
      %s128 = sphi 0, %s125
      %s129 = sphi 0, %s128
      %s145 = sphi 0, %s129
    $region4: #{tpu_custom_call.1} parent=1 // loop_header_branch
      %15 = sbr.rel (%p13) target = $region8
    $region5: #{tpu_custom_call.1} parent=1 // loop_body
      %s17 = ssub.s32 %s12, 1
      %s18 = ssub.s32 %s12, 2
      %s28 = sadd.s32 1, %s21
      %p29 = scmp.ge.s32.totalorder %s28, 1
      %s30 = scalar_select %p29, 0, %s28
      %s31 = sadd.s32 1, %s20
      %s32 = scalar_select %p29, %s31, %s20
      %p33 = scmp.ge.s32.totalorder %s32, 1
      %s34 = scalar_select %p33, 0, %s32
      %s35 = sadd.s32 1, %s19
      %s36 = scalar_select %p33, %s35, %s19
      %p37 = scmp.ge.s32.totalorder %s36, 2
      %s38 = scalar_select %p37, 0, %s36
      %s39 = ssub.s32 %s19, %s38
      %s40 = ssub.s32 %s21, %s30
      %s41 = sor.u32 %s39, %s40
      %p42 = scmp.eq.s32.totalorder %s41, 0
      %s44 = sadd.s32 %s43, 1
      %s45 = scalar_select %p42, %s43, %s44
      %p48 = pneg %p42
      %p49 = scmp.eq.s32.totalorder %s12, 1
      %p50 = por %p48, %p49
      %p51 = scmp.ne.s32.totalorder %s43, %s46
      %p52 = scmp.eq.s32.totalorder %s12, 0
      %p53 = por %p51, %p52
      %p54 = scmp.ne.s32.totalorder %s43, %s46
      %p55 = scmp.eq.s32.totalorder %s17, 1
      %p56 = por %p54, %p55
      %p57 = scmp.ne.s32.totalorder %s46, %s47
      %p58 = scmp.eq.s32.totalorder %s17, 0
      %p59 = por %p57, %p58
      %p60 = scmp.ne.s32.totalorder %s46, %s47
      %p61 = scmp.eq.s32.totalorder %s18, 1
      %p62 = por %p60, %p61
      %p64 = scmp.ne.s32.totalorder %s47, %s63
      %p65 = scmp.eq.s32.totalorder %s18, 0
      %p66 = por %p64, %p65
      %s67 = ssub.s32 %s20, %s34
      %p68 = scmp.eq.s32.totalorder %s67, 0
      %s70 = sadd.s32 %s69, 1
      %s71 = scalar_select %p68, %s69, %s70
      %p74 = pneg %p68
      %p75 = scmp.eq.s32.totalorder %s12, 1
      %p76 = por %p74, %p75
      %p77 = scmp.ne.s32.totalorder %s69, %s72
      %p78 = scmp.eq.s32.totalorder %s12, 0
      %p79 = por %p77, %p78
      %p80 = scmp.ne.s32.totalorder %s69, %s72
      %p81 = scmp.eq.s32.totalorder %s17, 1
      %p82 = por %p80, %p81
      %p83 = scmp.ne.s32.totalorder %s72, %s73
      %p84 = scmp.eq.s32.totalorder %s17, 0
      %p85 = por %p83, %p84
      %p86 = scmp.ne.s32.totalorder %s72, %s73
      %p87 = scmp.eq.s32.totalorder %s18, 1
      %p88 = por %p86, %p87
      %p90 = scmp.ne.s32.totalorder %s73, %s89
      %p91 = scmp.eq.s32.totalorder %s18, 0
      %p92 = por %p90, %p91
      %s93 = ssub.s32 %s20, %s34
      %p94 = scmp.eq.s32.totalorder %s93, 0
      %s96 = sadd.s32 %s95, 1
      %s97 = scalar_select %p94, %s95, %s96
      %p100 = pneg %p94
      %p101 = scmp.eq.s32.totalorder %s12, 1
      %p102 = por %p100, %p101
      %p103 = scmp.ne.s32.totalorder %s95, %s98
      %p104 = scmp.eq.s32.totalorder %s12, 0
      %p105 = por %p103, %p104
      %p106 = scmp.ne.s32.totalorder %s95, %s98
      %p107 = scmp.eq.s32.totalorder %s17, 1
      %p108 = por %p106, %p107
      %p109 = scmp.ne.s32.totalorder %s98, %s99
      %p110 = scmp.eq.s32.totalorder %s17, 0
      %p111 = por %p109, %p110
      %p112 = scmp.ne.s32.totalorder %s98, %s99
      %p113 = scmp.eq.s32.totalorder %s18, 1
      %p114 = por %p112, %p113
      %p116 = scmp.ne.s32.totalorder %s99, %s115
      %p117 = scmp.eq.s32.totalorder %s18, 0
      %p118 = por %p116, %p117
      %s119 = ssub.s32 %s19, %s38
      %s120 = ssub.s32 %s20, %s34
      %s121 = sor.u32 %s119, %s120
      %s122 = ssub.s32 %s21, %s30
      %s123 = sor.u32 %s121, %s122
      %p124 = scmp.eq.s32.totalorder %s123, 0
      %s126 = sadd.s32 %s125, 1
      %s127 = scalar_select %p124, %s125, %s126
      %p130 = pneg %p124
      %p131 = scmp.eq.s32.totalorder %s12, 1
      %p132 = por %p130, %p131
      %p133 = scmp.ne.s32.totalorder %s125, %s128
      %p134 = scmp.eq.s32.totalorder %s12, 0
      %p135 = por %p133, %p134
      %p136 = scmp.ne.s32.totalorder %s125, %s128
      %p137 = scmp.eq.s32.totalorder %s17, 1
      %p138 = por %p136, %p137
      %p139 = scmp.ne.s32.totalorder %s128, %s129
      %p140 = scmp.eq.s32.totalorder %s17, 0
      %p141 = por %p139, %p140
      %p142 = scmp.ne.s32.totalorder %s128, %s129
      %p143 = scmp.eq.s32.totalorder %s18, 1
      %p144 = por %p142, %p143
      %p146 = scmp.ne.s32.totalorder %s129, %s145
      %p147 = scmp.eq.s32.totalorder %s18, 0
      %p148 = por %p146, %p147
      %p149 = scmp.le.s32.totalorder 1, %s12
      %p150 = scmp.lt.s32.totalorder %s12, 3
      %p151 = pnand %p149, %p150
      %p152 = pneg %p151
      // Predicated region
      $region9: #{tpu_custom_call.1} parent=5 // pred_check
        _
      $region10: #{tpu_custom_call.1} parent=5 // pred_check_branch
        %154 = sbr.rel (%p151) target = $region12
      $region11: #{tpu_custom_call.1} parent=5 // pred_region
        %s155 = ssub.s32 %s12, 1
        // Predicated region
        $region13: #{tpu_custom_call.1} parent=11 // pred_check
          %p156 = pneg %p85
        $region14: #{tpu_custom_call.1} parent=11 // pred_check_branch
          %158 = sbr.rel (%p156) target = $region16
        $region15: #{tpu_custom_call.1} parent=11 // pred_region
          %p159 = scmp.lt.s32.totalorder %s23, 0
          %s160 = scalar_select %p159, %s23, 0
          %s161 = smul.addr %s160, 8
          %s162 = scalar_lea.vmem %s1, %s161
        $region16: #{tpu_custom_call.1} parent=11 // pred_fallthru
          _
        // Predicated region
        $region17: #{tpu_custom_call.1} parent=11 // pred_check
          %p163 = pneg %p111
        $region18: #{tpu_custom_call.1} parent=11 // pred_check_branch
          %165 = sbr.rel (%p163) target = $region20
        $region19: #{tpu_custom_call.1} parent=11 // pred_region
          %p166 = scmp.lt.s32.totalorder %s23, 0
          %s167 = scalar_select %p166, %s23, 0
          %s168 = smul.addr %s167, 8
          %s169 = scalar_lea.vmem %s2, %s168
        $region20: #{tpu_custom_call.1} parent=11 // pred_fallthru
          _
      $region12: #{tpu_custom_call.1} parent=5 // pred_fallthru
        _
      %p170 = scmp.lt.s32.totalorder %s12, 2
      // Predicated region
      $region21: #{tpu_custom_call.1} parent=5 // pred_check
        %p171 = pneg %p170
      $region22: #{tpu_custom_call.1} parent=5 // pred_check_branch
        %173 = sbr.rel (%p171) target = $region24
      $region23: #{tpu_custom_call.1} parent=5 // pred_region
        // Predicated region
        $region25: #{tpu_custom_call.1} parent=23 // pred_check
          %p174 = pneg %p53
        $region26: #{tpu_custom_call.1} parent=23 // pred_check_branch
          %176 = sbr.rel (%p174) target = $region28
        $region27: #{tpu_custom_call.1} parent=23 // pred_region
          %s177 = smul.u32 2, %s21
          %p178 = scmp.lt.s32.totalorder %s19, 1
          %s179 = scalar_select %p178, %s19, 1
          %p180 = scmp.lt.s32.totalorder %s177, 1
          %s181 = scalar_select %p180, %s177, 1
          %s182 = smul.addr %s179, 2
          %s183 = sadd.s32 %s181, %s182
          %s184 = smul.addr %s183, 4
          %s185 = scalar_lea.vmem %s0, %s184
          %s186 = smul.u32 2, %s21
        $region28: #{tpu_custom_call.1} parent=23 // pred_fallthru
          _
      $region24: #{tpu_custom_call.1} parent=5 // pred_fallthru
        _
      %p187 = scmp.le.s32.totalorder 1, %s12
      %p188 = scmp.lt.s32.totalorder %s12, 3
      %p189 = pnand %p187, %p188
      %p190 = pneg %p189
      // Predicated region
      $region29: #{tpu_custom_call.1} parent=5 // pred_check
        _
      $region30: #{tpu_custom_call.1} parent=5 // pred_check_branch
        %192 = sbr.rel (%p189) target = $region32
      $region31: #{tpu_custom_call.1} parent=5 // pred_region
        %s193 = ssub.s32 %s12, 1
        %s194 = smul.u32 2, %s24
        %p195 = scmp.lt.s32.totalorder %s22, 1
        %s196 = scalar_select %p195, %s22, 1
        %p197 = scmp.lt.s32.totalorder %s194, 1
        %s198 = scalar_select %p197, %s194, 1
        %s199 = smul.addr %s196, 2
        %s200 = sadd.s32 %s198, %s199
        %s201 = smul.addr %s200, 4
        %s202 = scalar_lea.vmem %s0, %s201
        %p203 = pneg %p59
        %p204 = pneg %p56
        %p205 = scmp.lt.s32.totalorder %s23, 0
        %s206 = scalar_select %p205, %s23, 0
        %s207 = smul.addr %s206, 8
        %s208 = scalar_lea.vmem %s1, %s207
        %p209 = pneg %p85
        %p210 = pneg %p82
        %p211 = scmp.lt.s32.totalorder %s23, 0
        %s212 = scalar_select %p211, %s23, 0
        %s213 = smul.addr %s212, 8
        %s214 = scalar_lea.vmem %s2, %s213
        %p215 = pneg %p111
        %p216 = pneg %p108
        %p217 = pneg %p141
        %p218 = pneg %p138
        %s219 = sand.u32 %s128, 1
        %s220 = scalar_lea.sflag [#allocation3], %s219
        %s221 = sand.u32 %s128, 1
        %s222 = smul.addr %s221, 16
        %s223 = scalar_lea.vmem [#allocation2], %s222
        %s224 = smul.u32 2, %s24
        %p225 = scmp.lt.s32.totalorder %s22, 1
        %s226 = scalar_select %p225, %s22, 1
        %p227 = scmp.lt.s32.totalorder %s224, 1
        %s228 = scalar_select %p227, %s224, 1
        %s229 = smul.addr %s226, 2
        %s230 = sadd.s32 %s228, %s229
        %s231 = smul.addr %s230, 4
        %s232 = scalar_lea.vmem %s0, %s231
        %s233 = smul.u32 2, %s24
        %p234 = scmp.lt.s32.totalorder %s23, 0
        %s235 = scalar_select %p234, %s23, 0
        %s236 = smul.addr %s235, 8
        %s237 = scalar_lea.vmem %s1, %s236
        %p238 = scmp.lt.s32.totalorder %s23, 0
        %s239 = scalar_select %p238, %s23, 0
        %s240 = smul.addr %s239, 8
        %s241 = scalar_lea.vmem %s2, %s240
        %s242 = smul.u32 2, %s24
        %v243 = vld [vmem:[%s232] sm:$0xff]
        %v244 = vld [vmem:[%s237] sm:$0xff]
        %v245 = vld [vmem:[%s241] sm:$0xff]
        %247 = vset.pattern.permute.xlu0 0
        %248 = vperm.xlu0 %247, %v245
        %v249 = vpop.permute.xlu0 %248
        %252 = vst [vmem:[#allocation1] ss:$2 sm:$0xff] %v243
        %v253 = vld.sshfl [vmem:[#allocation1] sm:$0xff pattern:$0x75316420]
        %v254 = vld.sshfl [vmem:[#allocation1 + $0x8] sm:$0xff pattern:$0x75316420]
        %vm255 = vcmask 31744
        %v257 = vsel %vm255, %v244, 0
        %vm259 = vcmask 1043456
        %v260 = vsel %vm259, %v253, 0
        %v262 = vsel %vm259, %v254, 0
        %264 = vmatpush.msra.mxu0 0.0
        %265 = vmatpush.msra.mxu0 0.0
        %266 = vmatpush.msra.mxu0 0.0
        %267 = vmatpush.msra.mxu0 0.0
        %268 = vmatpush.msra.mxu0 0.0
        %269 = vmatpush.msra.mxu0 0.0
        %270 = vmatpush.msra.mxu0 0.0
        %271 = vmatpush.msra.mxu0 0.0
        %272 = vmatpush.msra.mxu0 0.0
        %273 = vmatpush.msra.mxu0 0.0
        %274 = vmatpush.msra.mxu0 0.0
        %275 = vmatpush.msra.mxu0 0.0
        %276 = vmatpush.msra.mxu0 0.0
        %277 = vmatpush.msra.mxu0 0.0
        %278 = vmatpush.msra.mxu0 0.0
        %279 = vmatpush.msra.mxu0 %v260
        %280 = vmatmul.f32.gmra.mxu0 %v257
        %v281 = vpop.f32.mrf.mxu0
        %v282 = vadd.f32 %v249, %v281
        %283 = vdwg.mxu0
        %284 = vmatpush.msra.mxu0 0.0
        %285 = vmatpush.msra.mxu0 0.0
        %286 = vmatpush.msra.mxu0 0.0
        %287 = vmatpush.msra.mxu0 0.0
        %288 = vmatpush.msra.mxu0 0.0
        %289 = vmatpush.msra.mxu0 0.0
        %290 = vmatpush.msra.mxu0 0.0
        %291 = vmatpush.msra.mxu0 0.0
        %292 = vmatpush.msra.mxu0 0.0
        %293 = vmatpush.msra.mxu0 0.0
        %294 = vmatpush.msra.mxu0 0.0
        %295 = vmatpush.msra.mxu0 0.0
        %296 = vmatpush.msra.mxu0 0.0
        %297 = vmatpush.msra.mxu0 0.0
        %298 = vmatpush.msra.mxu0 0.0
        %299 = vmatpush.msra.mxu0 %v262
        %300 = vmatmul.f32.gmra.mxu0 %v257
        %v301 = vpop.f32.mrf.mxu0
        %v302 = vadd.f32 %v249, %v301
        %303 = vdwg.mxu0
        %304 = vst [vmem:[%s223] sm:$0xff] %v282
        %305 = vst [vmem:[%s223 + $0x8] sm:$0xff] %v302
        %s306 = sand.u32 %s128, 1
        %s307 = scalar_lea.sflag [#allocation3], %s306
        %s308 = sand.u32 %s128, 1
        %s309 = smul.addr %s308, 16
        %s310 = scalar_lea.vmem [#allocation2], %s309
        // Predicated region
        $region33: #{tpu_custom_call.1} parent=31 // pred_check
          %p311 = pneg %p138
        $region34: #{tpu_custom_call.1} parent=31 // pred_check_branch
          %313 = sbr.rel (%p311) target = $region36
        $region35: #{tpu_custom_call.1} parent=31 // pred_region
          %s314 = smul.u32 2, %s24
          %316 = vsyncadd %s307, 0
          %s317 = smul.addr %s23, 2
          %s318 = sadd.s32 %s314, %s317
          %s319 = smul.addr %s22, 2
          %s320 = sadd.s32 %s318, %s319
          %s321 = smul.addr %s320, 8
          %s322 = scalar_lea.hbm %s3, %s321
          %s324 = sshll.u32 %s310, 4
          %s325 = int_to_ptr.vmem [resolvable:$true] %s324
          %s326 = sshll.u32 %s322, 4
          %s327 = int_to_ptr.hbm [resolvable:$true] %s326
          %329 = dma.vmem_to_hbm [thread:$0]  %s325, 256, %s327, %s307
        $region36: #{tpu_custom_call.1} parent=31 // pred_fallthru
          _
      $region32: #{tpu_custom_call.1} parent=5 // pred_fallthru
        _
      %p330 = scmp.le.s32.totalorder 2, %s12
      // Predicated region
      $region37: #{tpu_custom_call.1} parent=5 // pred_check
        %p331 = pneg %p330
      $region38: #{tpu_custom_call.1} parent=5 // pred_check_branch
        %333 = sbr.rel (%p331) target = $region40
      $region39: #{tpu_custom_call.1} parent=5 // pred_region
        %s334 = ssub.s32 %s12, 2
        // Predicated region
        $region41: #{tpu_custom_call.1} parent=39 // pred_check
          %p335 = pneg %p144
        $region42: #{tpu_custom_call.1} parent=39 // pred_check_branch
          %337 = sbr.rel (%p335) target = $region44
        $region43: #{tpu_custom_call.1} parent=39 // pred_region
          %s338 = sand.u32 %s129, 1
          %s339 = scalar_lea.sflag [#allocation3], %s338
          %s340 = sand.u32 %s129, 1
          %s341 = smul.addr %s340, 16
          %s342 = scalar_lea.vmem [#allocation2], %s341
          %344 = dma.done %s339, 256
        $region44: #{tpu_custom_call.1} parent=39 // pred_fallthru
          _
      $region40: #{tpu_custom_call.1} parent=5 // pred_fallthru
        _
    $region6: #{tpu_custom_call.1} parent=1 // loop_footer
      %s16 = sadd.s32 1, %s12
    $region7: #{tpu_custom_call.1} parent=1 // loop_footer_branch
      %11 = sbr.rel target = $region3
    $region8: #{tpu_custom_call.1} parent=1 // loop_exit
      _
    %345 = vsyncpa [#allocation3], 1
    %s346 = scalar_lea.sflag [#allocation3], 1
    %347 = vsyncpa %s346, 1

</llo_original>
